<compile_context>
chip_gen: v7x
topology: tpu7x:2x2x1
jax: 0.10.0
libtpu: 0.0.40
codegen_flags: <defaults>
</compile_context>

<pallas_src>
import math
import functools

import jax
import jax.numpy as jnp
from jax import lax
from jax.experimental import pallas as pl
from jax.experimental.pallas import tpu as pltpu


def mha_kernel(xq_ref, xk_ref, xv_ref, wqkv_ref, bqkv_ref, wo_ref, bo_ref,
               out_ref, *, num_heads, seq_len, dim_in):
    """Per-grid-step (one batch element) shapes:
       xq/xk/xv : (K, M)        bf16
       wqkv     : (3*H, M, D)   bf16   rows ordered [q heads..., k heads..., v heads...]
                                       (1/sqrt(D) scale pre-folded into the q rows)
       bqkv     : (3*H, 1, D)   f32    (q biases pre-scaled)
       wo       : (H, D, M)     bf16   (output Linear weight, pre-transposed)
       bo       : (1, M)        f32
       out      : (K, M)
    """
    H = num_heads
    xq = xq_ref[...]
    xk = xk_ref[...]
    xv = xv_ref[...]

    # Accumulate the output projection per head directly in vregs
    # (replaces the (N*K, H*D) concat scratch slab + final slab matmul).
    acc = jnp.zeros((seq_len, dim_in), jnp.float32)

    # TODO(synk): boolean attention-mask path (scaled[mask] = -1e9) not
    # implemented; the module is exercised with mask=None here.
    for h in range(H):                      # static unroll, H is small
        # Per-head projections via static Ref slices of the packed weights
        # (bf16 x bf16 MXU matmuls, f32 accumulation, f32 bias add).
        q = jnp.dot(xq, wqkv_ref[0 * H + h],
                    preferred_element_type=jnp.float32) + bqkv_ref[0 * H + h]
        k = jnp.dot(xk, wqkv_ref[1 * H + h],
                    preferred_element_type=jnp.float32) + bqkv_ref[1 * H + h]
        v = jnp.dot(xv, wqkv_ref[2 * H + h],
                    preferred_element_type=jnp.float32) + bqkv_ref[2 * H + h]

        # scores = q @ k^T (contraction over last dims, no explicit k.T);
        # the 1/sqrt(dim_out) scale is already folded into wq / bq.
        scores = lax.dot_general(
            q, k, dimension_numbers=(((1,), (1,)), ((), ())),
            preferred_element_type=jnp.float32)

        # Softmax in f32 (max/exp on VPU/EUP, approx reciprocal on EUP slot).
        scores = scores - jnp.max(scores, axis=-1, keepdims=True)
        p = jnp.exp(scores)
        inv = pl.reciprocal(jnp.sum(p, axis=-1, keepdims=True), approx=True)
        head_out = jnp.dot(p * inv, v, preferred_element_type=jnp.float32)

        # Fuse the output Linear per head: acc += head_out @ wo[h].
        acc = acc + jnp.dot(head_out.astype(jnp.bfloat16), wo_ref[h],
                            preferred_element_type=jnp.float32)

    out_ref[...] = (acc + bo_ref[...]).astype(out_ref.dtype)


def multi_head_attention(query, key, value, params):
    """query/key/value: (N, K, M) float32; params in PyTorch nn.Linear layout.
       Returns (N, K, M)."""
    N, K, M = query.shape
    H, D, _ = params["wq"].shape
    scale = 1.0 / math.sqrt(float(D))

    # One-time host-side packing (plain XLA ops, outside the kernel):
    #   * pre-transpose nn.Linear (out,in) weights to (in,out),
    #   * fold the attention scale into wq / bq,
    #   * cast matmul operands to bf16; biases stay f32.
    wq_t = jnp.transpose(params["wq"], (0, 2, 1)) * scale          # (H, M, D)
    wk_t = jnp.transpose(params["wk"], (0, 2, 1))                  # (H, M, D)
    wv_t = jnp.transpose(params["wv"], (0, 2, 1))                  # (H, M, D)
    w_qkv = jnp.concatenate([wq_t, wk_t, wv_t],
                            axis=0).astype(jnp.bfloat16)           # (3H, M, D)
    b_qkv = jnp.concatenate([params["bq"] * scale, params["bk"], params["bv"]],
                            axis=0).reshape(3 * H, 1, D).astype(jnp.float32)
    wo_t = params["wo"].T.reshape(H, D, M).astype(jnp.bfloat16)    # (H, D, M)
    bo = params["bo"].astype(jnp.float32)                          # (1, M)

    xq = query.astype(jnp.bfloat16)
    xk = key.astype(jnp.bfloat16)
    xv = value.astype(jnp.bfloat16)

    kernel = functools.partial(mha_kernel, num_heads=H, seq_len=K, dim_in=M)

    # Blocked BlockSpecs place every operand in VMEM; the weight blocks map to
    # the same block index for all grid steps, so they stay resident.
    return pl.pallas_call(
        kernel,
        out_shape=jax.ShapeDtypeStruct((N, K, M), query.dtype),
        grid=(N,),
        in_specs=[
            pl.BlockSpec((None, K, M), lambda n: (n, 0, 0)),   # xq
            pl.BlockSpec((None, K, M), lambda n: (n, 0, 0)),   # xk
            pl.BlockSpec((None, K, M), lambda n: (n, 0, 0)),   # xv
            pl.BlockSpec((3 * H, M, D), lambda n: (0, 0, 0)),  # packed q/k/v weights
            pl.BlockSpec((3 * H, 1, D), lambda n: (0, 0, 0)),  # packed q/k/v biases
            pl.BlockSpec((H, D, M), lambda n: (0, 0, 0)),      # output weight
            pl.BlockSpec((1, M), lambda n: (0, 0)),            # output bias
        ],
        out_specs=pl.BlockSpec((None, K, M), lambda n: (n, 0, 0)),
        compiler_params=pltpu.CompilerParams(
            dimension_semantics=("parallel",),        # batch axis -> megacore/v7x
            vmem_limit_bytes=32 * 1024 * 1024),       # explicit, v7x-safe budget
    )(xq, xk, xv, w_qkv, b_qkv, wo_t, bo)


def reference_mha(query, key, value, params):
    """Pure-JAX f32 reproduction of the PyTorch forward (mask=None)."""
    H, dim_out, M = params["wq"].shape
    outs = []
    for h in range(H):
        q = jnp.einsum("nkm,dm->nkd", query, params["wq"][h]) + params["bq"][h]
        k = jnp.einsum("nkm,dm->nkd", key, params["wk"][h]) + params["bk"][h]
        v = jnp.einsum("nkm,dm->nkd", value, params["wv"][h]) + params["bv"][h]
        scores = jnp.einsum("nqd,nkd->nqk", q, k) / math.sqrt(float(dim_out))
        w = jax.nn.softmax(scores, axis=-1)
        outs.append(jnp.einsum("nqk,nkd->nqd", w, v))
    concat = jnp.concatenate(outs, axis=-1)
    return jnp.einsum("nkh,mh->nkm", concat, params["wo"]) + params["bo"][0]


def xavier_uniform(key, shape):
    fan_out, fan_in = shape[-2], shape[-1]
    bound = math.sqrt(6.0 / (fan_in + fan_out))
    return jax.random.uniform(key, shape, jnp.float32, -bound, bound)


def init_params(key, num_heads, dim_in, dim_out):
    ks = jax.random.split(key, 8)
    wq = xavier_uniform(ks[0], (num_heads, dim_out, dim_in))
    wk = xavier_uniform(ks[1], (num_heads, dim_out, dim_in))
    wv = xavier_uniform(ks[2], (num_heads, dim_out, dim_in))
    wo = xavier_uniform(ks[3], (dim_in, num_heads * dim_out))
    # nn.Linear default bias init: U(-1/sqrt(fan_in), 1/sqrt(fan_in))
    bnd_h = 1.0 / math.sqrt(dim_in)
    bnd_o = 1.0 / math.sqrt(num_heads * dim_out)
    bq = jax.random.uniform(ks[4], (num_heads, dim_out), jnp.float32, -bnd_h, bnd_h)
    bk = jax.random.uniform(ks[5], (num_heads, dim_out), jnp.float32, -bnd_h, bnd_h)
    bv = jax.random.uniform(ks[6], (num_heads, dim_out), jnp.float32, -bnd_h, bnd_h)
    bo = jax.random.uniform(ks[7], (1, dim_in), jnp.float32, -bnd_o, bnd_o)
    return dict(wq=wq, bq=bq, wk=wk, bk=bk, wv=wv, bv=bv, wo=wo, bo=bo)


if __name__ == "__main__":
    N, K, M = 2, 8, 32          # batch, seq length, embedding dim (dim_in)
    num_heads, dim_out = 2, 16

    key = jax.random.PRNGKey(0)
    k_p, k_q, k_k, k_v = jax.random.split(key, 4)

    params = init_params(k_p, num_heads, M, dim_out)
    query = jax.random.normal(k_q, (N, K, M), jnp.float32)
    keyt = jax.random.normal(k_k, (N, K, M), jnp.float32)
    value = jax.random.normal(k_v, (N, K, M), jnp.float32)

    out = multi_head_attention(query, keyt, value, params)
    out = jax.block_until_ready(out)

    ref = reference_mha(query, keyt, value, params)
    assert out.shape == (N, K, M), out.shape
    # Tolerance accounts for bf16 matmul operands (MXU-native path) and the
    # EUP approximate reciprocal in the softmax denominator; observed error
    # is ~1e-2 absolute at these scales, checked with ~3x margin.
    assert jnp.allclose(out, ref, atol=3e-2, rtol=3e-2), \
        float(jnp.max(jnp.abs(out - ref)))

    print("KERNEL_OK")
</pallas_src>

<mosaic_0001>
module attributes {stable_mosaic.version = 11 : i64} {
  func.func @mha_kernel(%arg0: i32, %arg1: memref<1x8x32xbf16, #tpu.memory_space<vmem>>, %arg2: memref<1x8x32xbf16, #tpu.memory_space<vmem>>, %arg3: memref<1x8x32xbf16, #tpu.memory_space<vmem>>, %arg4: memref<6x32x16xbf16, #tpu.memory_space<vmem>>, %arg5: memref<6x1x16xf32, #tpu.memory_space<vmem>>, %arg6: memref<2x16x32xbf16, #tpu.memory_space<vmem>>, %arg7: memref<1x32xf32, #tpu.memory_space<vmem>>, %arg8: memref<1x8x32xf32, #tpu.memory_space<vmem>>) attributes {dimension_semantics = [#tpu.dimension_semantics<parallel>], iteration_bounds = array<i64: 2>, scalar_prefetch = 0 : i64, scratch_operands = 0 : i64, tpu.core_type = #tpu.core_type<tc>, window_params = [{transform_indices = @transform_0, window_bounds = array<i64: 1, 8, 32>}, {transform_indices = @transform_1, window_bounds = array<i64: 1, 8, 32>}, {transform_indices = @transform_2, window_bounds = array<i64: 1, 8, 32>}, {pipeline_mode = #tpu.pipeline_mode<synchronous>, transform_indices = @transform_3, window_bounds = array<i64: 6, 32, 16>}, {pipeline_mode = #tpu.pipeline_mode<synchronous>, transform_indices = @transform_4, window_bounds = array<i64: 6, 1, 16>}, {pipeline_mode = #tpu.pipeline_mode<synchronous>, transform_indices = @transform_5, window_bounds = array<i64: 2, 16, 32>}, {pipeline_mode = #tpu.pipeline_mode<synchronous>, transform_indices = @transform_6, window_bounds = array<i64: 1, 32>}, {transform_indices = @transform_7, window_bounds = array<i64: 1, 8, 32>}]} {
    %c0 = arith.constant 0 : index
    %c0_0 = arith.constant 0 : index
    %c0_1 = arith.constant 0 : index
    %0 = vector.load %arg1[%c0, %c0_0, %c0_1] : memref<1x8x32xbf16, #tpu.memory_space<vmem>>, vector<1x8x32xbf16>
    %1 = vector.shape_cast %0 : vector<1x8x32xbf16> to vector<8x32xbf16>
    %c0_2 = arith.constant 0 : index
    %c0_3 = arith.constant 0 : index
    %c0_4 = arith.constant 0 : index
    %2 = vector.load %arg2[%c0_2, %c0_3, %c0_4] : memref<1x8x32xbf16, #tpu.memory_space<vmem>>, vector<1x8x32xbf16>
    %3 = vector.shape_cast %2 : vector<1x8x32xbf16> to vector<8x32xbf16>
    %c0_5 = arith.constant 0 : index
    %c0_6 = arith.constant 0 : index
    %c0_7 = arith.constant 0 : index
    %4 = vector.load %arg3[%c0_5, %c0_6, %c0_7] : memref<1x8x32xbf16, #tpu.memory_space<vmem>>, vector<1x8x32xbf16>
    %5 = vector.shape_cast %4 : vector<1x8x32xbf16> to vector<8x32xbf16>
    %cst = arith.constant 0.000000e+00 : f32
    %6 = vector.broadcast %cst : f32 to vector<8x32xf32>
    %c0_8 = arith.constant 0 : index
    %c0_9 = arith.constant 0 : index
    %c0_10 = arith.constant 0 : index
    %7 = vector.load %arg4[%c0_8, %c0_9, %c0_10] : memref<6x32x16xbf16, #tpu.memory_space<vmem>>, vector<1x32x16xbf16>
    %8 = vector.shape_cast %7 : vector<1x32x16xbf16> to vector<32x16xbf16>
    %cst_11 = arith.constant dense<0.000000e+00> : vector<8x16xf32>
    %9 = tpu.matmul %1, %8, %cst_11 {dimension_numbers = #tpu.dot_dimension_numbers<[1], [0], [0], [1], [0, 0, 1, 1], [], []>} : vector<8x32xbf16>, vector<32x16xbf16>, vector<8x16xf32> -> vector<8x16xf32>
    %c0_12 = arith.constant 0 : index
    %c0_13 = arith.constant 0 : index
    %c0_14 = arith.constant 0 : index
    %10 = vector.load %arg5[%c0_12, %c0_13, %c0_14] : memref<6x1x16xf32, #tpu.memory_space<vmem>>, vector<1x1x16xf32>
    %11 = vector.shape_cast %10 : vector<1x1x16xf32> to vector<1x16xf32>
    %12 = vector.broadcast %11 : vector<1x16xf32> to vector<8x16xf32>
    %13 = arith.addf %9, %12 : vector<8x16xf32>
    %c2 = arith.constant 2 : index
    %c0_15 = arith.constant 0 : index
    %c0_16 = arith.constant 0 : index
    %14 = vector.load %arg4[%c2, %c0_15, %c0_16] : memref<6x32x16xbf16, #tpu.memory_space<vmem>>, vector<1x32x16xbf16>
    %15 = vector.shape_cast %14 : vector<1x32x16xbf16> to vector<32x16xbf16>
    %cst_17 = arith.constant dense<0.000000e+00> : vector<8x16xf32>
    %16 = tpu.matmul %3, %15, %cst_17 {dimension_numbers = #tpu.dot_dimension_numbers<[1], [0], [0], [1], [0, 0, 1, 1], [], []>} : vector<8x32xbf16>, vector<32x16xbf16>, vector<8x16xf32> -> vector<8x16xf32>
    %c2_18 = arith.constant 2 : index
    %c0_19 = arith.constant 0 : index
    %c0_20 = arith.constant 0 : index
    %17 = vector.load %arg5[%c2_18, %c0_19, %c0_20] : memref<6x1x16xf32, #tpu.memory_space<vmem>>, vector<1x1x16xf32>
    %18 = vector.shape_cast %17 : vector<1x1x16xf32> to vector<1x16xf32>
    %19 = vector.broadcast %18 : vector<1x16xf32> to vector<8x16xf32>
    %20 = arith.addf %16, %19 : vector<8x16xf32>
    %c4 = arith.constant 4 : index
    %c0_21 = arith.constant 0 : index
    %c0_22 = arith.constant 0 : index
    %21 = vector.load %arg4[%c4, %c0_21, %c0_22] : memref<6x32x16xbf16, #tpu.memory_space<vmem>>, vector<1x32x16xbf16>
    %22 = vector.shape_cast %21 : vector<1x32x16xbf16> to vector<32x16xbf16>
    %cst_23 = arith.constant dense<0.000000e+00> : vector<8x16xf32>
    %23 = tpu.matmul %5, %22, %cst_23 {dimension_numbers = #tpu.dot_dimension_numbers<[1], [0], [0], [1], [0, 0, 1, 1], [], []>} : vector<8x32xbf16>, vector<32x16xbf16>, vector<8x16xf32> -> vector<8x16xf32>
    %c4_24 = arith.constant 4 : index
    %c0_25 = arith.constant 0 : index
    %c0_26 = arith.constant 0 : index
    %24 = vector.load %arg5[%c4_24, %c0_25, %c0_26] : memref<6x1x16xf32, #tpu.memory_space<vmem>>, vector<1x1x16xf32>
    %25 = vector.shape_cast %24 : vector<1x1x16xf32> to vector<1x16xf32>
    %26 = vector.broadcast %25 : vector<1x16xf32> to vector<8x16xf32>
    %27 = arith.addf %23, %26 : vector<8x16xf32>
    %cst_27 = arith.constant dense<0.000000e+00> : vector<8x8xf32>
    %28 = tpu.matmul %13, %20, %cst_27 {dimension_numbers = #tpu.dot_dimension_numbers<[1], [1], [0], [0], [0, 0, 1, 0], [], []>} : vector<8x16xf32>, vector<8x16xf32>, vector<8x8xf32> -> vector<8x8xf32>
    %cst_28 = arith.constant dense<0xFF800000> : vector<8xf32>
    %29 = vector.multi_reduction <maximumf>, %28, %cst_28 [1] : vector<8x8xf32> to vector<8xf32>
    %30 = vector.shape_cast %29 : vector<8xf32> to vector<8x1xf32>
    %31 = vector.broadcast %30 : vector<8x1xf32> to vector<8x8xf32>
    %32 = arith.subf %28, %31 : vector<8x8xf32>
    %33 = math.exp %32 : vector<8x8xf32>
    %cst_29 = arith.constant dense<0.000000e+00> : vector<8xf32>
    %34 = vector.multi_reduction <add>, %33, %cst_29 [1] : vector<8x8xf32> to vector<8xf32>
    %35 = vector.shape_cast %34 : vector<8xf32> to vector<8x1xf32>
    %36 = tpu.reciprocal %35 {approx = true} : vector<8x1xf32> -> vector<8x1xf32>
    %37 = vector.broadcast %36 : vector<8x1xf32> to vector<8x8xf32>
    %38 = arith.mulf %33, %37 : vector<8x8xf32>
    %cst_30 = arith.constant dense<0.000000e+00> : vector<8x16xf32>
    %39 = tpu.matmul %38, %27, %cst_30 {dimension_numbers = #tpu.dot_dimension_numbers<[1], [0], [0], [1], [0, 0, 1, 1], [], []>} : vector<8x8xf32>, vector<8x16xf32>, vector<8x16xf32> -> vector<8x16xf32>
    %40 = arith.truncf %39 : vector<8x16xf32> to vector<8x16xbf16>
    %c0_31 = arith.constant 0 : index
    %c0_32 = arith.constant 0 : index
    %c0_33 = arith.constant 0 : index
    %41 = vector.load %arg6[%c0_31, %c0_32, %c0_33] : memref<2x16x32xbf16, #tpu.memory_space<vmem>>, vector<1x16x32xbf16>
    %42 = vector.shape_cast %41 : vector<1x16x32xbf16> to vector<16x32xbf16>
    %cst_34 = arith.constant dense<0.000000e+00> : vector<8x32xf32>
    %43 = tpu.matmul %40, %42, %cst_34 {dimension_numbers = #tpu.dot_dimension_numbers<[1], [0], [0], [1], [0, 0, 1, 1], [], []>} : vector<8x16xbf16>, vector<16x32xbf16>, vector<8x32xf32> -> vector<8x32xf32>
    %44 = arith.addf %6, %43 : vector<8x32xf32>
    %c1 = arith.constant 1 : index
    %c0_35 = arith.constant 0 : index
    %c0_36 = arith.constant 0 : index
    %45 = vector.load %arg4[%c1, %c0_35, %c0_36] : memref<6x32x16xbf16, #tpu.memory_space<vmem>>, vector<1x32x16xbf16>
    %46 = vector.shape_cast %45 : vector<1x32x16xbf16> to vector<32x16xbf16>
    %cst_37 = arith.constant dense<0.000000e+00> : vector<8x16xf32>
    %47 = tpu.matmul %1, %46, %cst_37 {dimension_numbers = #tpu.dot_dimension_numbers<[1], [0], [0], [1], [0, 0, 1, 1], [], []>} : vector<8x32xbf16>, vector<32x16xbf16>, vector<8x16xf32> -> vector<8x16xf32>
    %c1_38 = arith.constant 1 : index
    %c0_39 = arith.constant 0 : index
    %c0_40 = arith.constant 0 : index
    %48 = vector.load %arg5[%c1_38, %c0_39, %c0_40] : memref<6x1x16xf32, #tpu.memory_space<vmem>>, vector<1x1x16xf32>
    %49 = vector.shape_cast %48 : vector<1x1x16xf32> to vector<1x16xf32>
    %50 = vector.broadcast %49 : vector<1x16xf32> to vector<8x16xf32>
    %51 = arith.addf %47, %50 : vector<8x16xf32>
    %c3 = arith.constant 3 : index
    %c0_41 = arith.constant 0 : index
    %c0_42 = arith.constant 0 : index
    %52 = vector.load %arg4[%c3, %c0_41, %c0_42] : memref<6x32x16xbf16, #tpu.memory_space<vmem>>, vector<1x32x16xbf16>
    %53 = vector.shape_cast %52 : vector<1x32x16xbf16> to vector<32x16xbf16>
    %cst_43 = arith.constant dense<0.000000e+00> : vector<8x16xf32>
    %54 = tpu.matmul %3, %53, %cst_43 {dimension_numbers = #tpu.dot_dimension_numbers<[1], [0], [0], [1], [0, 0, 1, 1], [], []>} : vector<8x32xbf16>, vector<32x16xbf16>, vector<8x16xf32> -> vector<8x16xf32>
    %c3_44 = arith.constant 3 : index
    %c0_45 = arith.constant 0 : index
    %c0_46 = arith.constant 0 : index
    %55 = vector.load %arg5[%c3_44, %c0_45, %c0_46] : memref<6x1x16xf32, #tpu.memory_space<vmem>>, vector<1x1x16xf32>
    %56 = vector.shape_cast %55 : vector<1x1x16xf32> to vector<1x16xf32>
    %57 = vector.broadcast %56 : vector<1x16xf32> to vector<8x16xf32>
    %58 = arith.addf %54, %57 : vector<8x16xf32>
    %c5 = arith.constant 5 : index
    %c0_47 = arith.constant 0 : index
    %c0_48 = arith.constant 0 : index
    %59 = vector.load %arg4[%c5, %c0_47, %c0_48] : memref<6x32x16xbf16, #tpu.memory_space<vmem>>, vector<1x32x16xbf16>
    %60 = vector.shape_cast %59 : vector<1x32x16xbf16> to vector<32x16xbf16>
    %cst_49 = arith.constant dense<0.000000e+00> : vector<8x16xf32>
    %61 = tpu.matmul %5, %60, %cst_49 {dimension_numbers = #tpu.dot_dimension_numbers<[1], [0], [0], [1], [0, 0, 1, 1], [], []>} : vector<8x32xbf16>, vector<32x16xbf16>, vector<8x16xf32> -> vector<8x16xf32>
    %c5_50 = arith.constant 5 : index
    %c0_51 = arith.constant 0 : index
    %c0_52 = arith.constant 0 : index
    %62 = vector.load %arg5[%c5_50, %c0_51, %c0_52] : memref<6x1x16xf32, #tpu.memory_space<vmem>>, vector<1x1x16xf32>
    %63 = vector.shape_cast %62 : vector<1x1x16xf32> to vector<1x16xf32>
    %64 = vector.broadcast %63 : vector<1x16xf32> to vector<8x16xf32>
    %65 = arith.addf %61, %64 : vector<8x16xf32>
    %cst_53 = arith.constant dense<0.000000e+00> : vector<8x8xf32>
    %66 = tpu.matmul %51, %58, %cst_53 {dimension_numbers = #tpu.dot_dimension_numbers<[1], [1], [0], [0], [0, 0, 1, 0], [], []>} : vector<8x16xf32>, vector<8x16xf32>, vector<8x8xf32> -> vector<8x8xf32>
    %cst_54 = arith.constant dense<0xFF800000> : vector<8xf32>
    %67 = vector.multi_reduction <maximumf>, %66, %cst_54 [1] : vector<8x8xf32> to vector<8xf32>
    %68 = vector.shape_cast %67 : vector<8xf32> to vector<8x1xf32>
    %69 = vector.broadcast %68 : vector<8x1xf32> to vector<8x8xf32>
    %70 = arith.subf %66, %69 : vector<8x8xf32>
    %71 = math.exp %70 : vector<8x8xf32>
    %cst_55 = arith.constant dense<0.000000e+00> : vector<8xf32>
    %72 = vector.multi_reduction <add>, %71, %cst_55 [1] : vector<8x8xf32> to vector<8xf32>
    %73 = vector.shape_cast %72 : vector<8xf32> to vector<8x1xf32>
    %74 = tpu.reciprocal %73 {approx = true} : vector<8x1xf32> -> vector<8x1xf32>
    %75 = vector.broadcast %74 : vector<8x1xf32> to vector<8x8xf32>
    %76 = arith.mulf %71, %75 : vector<8x8xf32>
    %cst_56 = arith.constant dense<0.000000e+00> : vector<8x16xf32>
    %77 = tpu.matmul %76, %65, %cst_56 {dimension_numbers = #tpu.dot_dimension_numbers<[1], [0], [0], [1], [0, 0, 1, 1], [], []>} : vector<8x8xf32>, vector<8x16xf32>, vector<8x16xf32> -> vector<8x16xf32>
    %78 = arith.truncf %77 : vector<8x16xf32> to vector<8x16xbf16>
    %c1_57 = arith.constant 1 : index
    %c0_58 = arith.constant 0 : index
    %c0_59 = arith.constant 0 : index
    %79 = vector.load %arg6[%c1_57, %c0_58, %c0_59] : memref<2x16x32xbf16, #tpu.memory_space<vmem>>, vector<1x16x32xbf16>
    %80 = vector.shape_cast %79 : vector<1x16x32xbf16> to vector<16x32xbf16>
    %cst_60 = arith.constant dense<0.000000e+00> : vector<8x32xf32>
    %81 = tpu.matmul %78, %80, %cst_60 {dimension_numbers = #tpu.dot_dimension_numbers<[1], [0], [0], [1], [0, 0, 1, 1], [], []>} : vector<8x16xbf16>, vector<16x32xbf16>, vector<8x32xf32> -> vector<8x32xf32>
    %82 = arith.addf %44, %81 : vector<8x32xf32>
    %c0_61 = arith.constant 0 : index
    %c0_62 = arith.constant 0 : index
    %83 = vector.load %arg7[%c0_61, %c0_62] : memref<1x32xf32, #tpu.memory_space<vmem>>, vector<1x32xf32>
    %84 = vector.broadcast %83 : vector<1x32xf32> to vector<8x32xf32>
    %85 = arith.addf %82, %84 : vector<8x32xf32>
    %c0_63 = arith.constant 0 : index
    %c0_64 = arith.constant 0 : index
    %c0_65 = arith.constant 0 : index
    %86 = vector.load %arg8[%c0_63, %c0_64, %c0_65] : memref<1x8x32xf32, #tpu.memory_space<vmem>>, vector<1x8x32xf32>
    %87 = vector.shape_cast %86 : vector<1x8x32xf32> to vector<8x32xf32>
    %88 = vector.shape_cast %85 : vector<8x32xf32> to vector<1x8x32xf32>
    tpu.vector_store %arg8[%c0_63, %c0_64, %c0_65], %88 {strides = array<i32>} : memref<1x8x32xf32, #tpu.memory_space<vmem>>, vector<1x8x32xf32>,
    return
  }
  func.func @transform_0(%arg0: i32) -> (i32, i32, i32) {
    %c0_i32 = arith.constant 0 : i32
    %c0_i32_0 = arith.constant 0 : i32
    %c0_i32_1 = arith.constant 0 : i32
    return %arg0, %c0_i32, %c0_i32_0 : i32, i32, i32
  }
  func.func @transform_1(%arg0: i32) -> (i32, i32, i32) {
    %c0_i32 = arith.constant 0 : i32
    %c0_i32_0 = arith.constant 0 : i32
    %c0_i32_1 = arith.constant 0 : i32
    return %arg0, %c0_i32, %c0_i32_0 : i32, i32, i32
  }
  func.func @transform_2(%arg0: i32) -> (i32, i32, i32) {
    %c0_i32 = arith.constant 0 : i32
    %c0_i32_0 = arith.constant 0 : i32
    %c0_i32_1 = arith.constant 0 : i32
    return %arg0, %c0_i32, %c0_i32_0 : i32, i32, i32
  }
  func.func @transform_3(%arg0: i32) -> (i32, i32, i32) {
    %c0_i32 = arith.constant 0 : i32
    %c0_i32_0 = arith.constant 0 : i32
    %c0_i32_1 = arith.constant 0 : i32
    %c0_i32_2 = arith.constant 0 : i32
    return %c0_i32, %c0_i32_0, %c0_i32_1 : i32, i32, i32
  }
  func.func @transform_4(%arg0: i32) -> (i32, i32, i32) {
    %c0_i32 = arith.constant 0 : i32
    %c0_i32_0 = arith.constant 0 : i32
    %c0_i32_1 = arith.constant 0 : i32
    %c0_i32_2 = arith.constant 0 : i32
    return %c0_i32, %c0_i32_0, %c0_i32_1 : i32, i32, i32
  }
  func.func @transform_5(%arg0: i32) -> (i32, i32, i32) {
    %c0_i32 = arith.constant 0 : i32
    %c0_i32_0 = arith.constant 0 : i32
    %c0_i32_1 = arith.constant 0 : i32
    %c0_i32_2 = arith.constant 0 : i32
    return %c0_i32, %c0_i32_0, %c0_i32_1 : i32, i32, i32
  }
  func.func @transform_6(%arg0: i32) -> (i32, i32) {
    %c0_i32 = arith.constant 0 : i32
    %c0_i32_0 = arith.constant 0 : i32
    %c0_i32_1 = arith.constant 0 : i32
    return %c0_i32, %c0_i32_0 : i32, i32
  }
  func.func @transform_7(%arg0: i32) -> (i32, i32, i32) {
    %c0_i32 = arith.constant 0 : i32
    %c0_i32_0 = arith.constant 0 : i32
    %c0_i32_1 = arith.constant 0 : i32
    return %arg0, %c0_i32, %c0_i32_0 : i32, i32, i32
  }
}

</mosaic_0001>

<llo_original>
// kernel: tpu_custom_call.1
$region0: #{tpu_custom_call.1}
  #allocation0 [shape = 'u32[]', space=smem, size = 0x4, offset = 0x4, fixed_abs, tag = 'smem constant byte address 0x4 - core index']
  #allocation1 [shape = 'u32[144,128]{1,0:T(1,128)}', space=vmem, size = 0x12000, scoped, tag = 'internal scratch']
  %s0 = inlined_call_operand.vmem [shape: bf16[2,8,32], index: 0, kind: input, shape index: {}]
  %s1 = inlined_call_operand.vmem [shape: bf16[2,8,32], index: 1, kind: input, shape index: {}]
  %s2 = inlined_call_operand.vmem [shape: bf16[2,8,32], index: 2, kind: input, shape index: {}]
  %s3 = inlined_call_operand.vmem [shape: bf16[6,32,16], index: 3, kind: input, shape index: {}]
  %s4 = inlined_call_operand.vmem [shape: f32[6,1,16], index: 4, kind: input, shape index: {}]
  %s5 = inlined_call_operand.vmem [shape: bf16[2,16,32], index: 5, kind: input, shape index: {}]
  %s6 = inlined_call_operand.vmem [shape: f32[1,32], index: 6, kind: input, shape index: {}]
  %s7 = inlined_call_operand.hbm [shape: f32[2,8,32], index: 7, kind: output, shape index: {}]
  %s8 = sld [smem:[#allocation0]]
  $region61: #{tpu_custom_call.1} parent=0
    _
  %s10 = ssub.s32 1, %s8
  %s11 = scalar_select 0, %s10, %s8
  $region1: #{tpu_custom_call.1} parent=0
    #allocation2 [shape = 'u8[8192]{0}', space=vmem, size = 0x2000, scoped, tag = 'output window, operand 0']
    #allocation3 [shape = 's32[2]{0}', space=sflag, size = 0x8, scoped, tag = 'scoped memory for tpu_custom_call.1']
    %12 = vsyncpa [#allocation3], 0
    %s13 = scalar_lea.sflag [#allocation3], 1
    %14 = vsyncpa %s13, 0
    loop: start=0, step=1, limit=4
    $region2: #{tpu_custom_call.1} parent=1 // loop_pre_header
      _
    $region3: #{tpu_custom_call.1} parent=1 // loop_header
      %s16 = sphi 0, %s20
      %p17 = scmp.ge.s32.totalorder %s16, 4
      %s26 = sphi 0, %s28
      %s29 = sphi 0, %s26
      %s30 = sphi 0, %s29
      %s46 = sphi 0, %s30
      %s52 = sphi 0, %s54
      %s55 = sphi 0, %s52
      %s56 = sphi 0, %s55
      %s72 = sphi 0, %s56
      %s78 = sphi 0, %s80
      %s81 = sphi 0, %s78
      %s82 = sphi 0, %s81
      %s98 = sphi 0, %s82
      %s102 = sphi 0, %s102
      %s104 = sphi 0, %s102
      %s105 = sphi 0, %s104
      %s119 = sphi 0, %s105
      %s123 = sphi 0, %s123
      %s125 = sphi 0, %s123
      %s126 = sphi 0, %s125
      %s140 = sphi 0, %s126
      %s144 = sphi 0, %s144
      %s146 = sphi 0, %s144
      %s147 = sphi 0, %s146
      %s161 = sphi 0, %s147
      %s165 = sphi 0, %s165
      %s167 = sphi 0, %s165
      %s168 = sphi 0, %s167
      %s182 = sphi 0, %s168
      %s188 = sphi 0, %s190
      %s191 = sphi 0, %s188
      %s192 = sphi 0, %s191
      %s208 = sphi 0, %s192
    $region4: #{tpu_custom_call.1} parent=1 // loop_header_branch
      %19 = sbr.rel (%p17) target = $region8
    $region5: #{tpu_custom_call.1} parent=1 // loop_body
      %s21 = ssub.s32 %s16, 1
      %s22 = ssub.s32 %s16, 2
      %s23 = sadd.s32 %s16, 1
      %s24 = ssub.s32 %s16, %s23
      %p25 = scmp.eq.s32.totalorder %s24, 0
      %s27 = sadd.s32 %s26, 1
      %s28 = scalar_select %p25, %s26, %s27
      %p31 = pneg %p25
      %p32 = scmp.eq.s32.totalorder %s16, 1
      %p33 = por %p31, %p32
      %p34 = scmp.ne.s32.totalorder %s26, %s29
      %p35 = scmp.eq.s32.totalorder %s16, 0
      %p36 = por %p34, %p35
      %p37 = scmp.ne.s32.totalorder %s26, %s29
      %p38 = scmp.eq.s32.totalorder %s21, 1
      %p39 = por %p37, %p38
      %p40 = scmp.ne.s32.totalorder %s29, %s30
      %p41 = scmp.eq.s32.totalorder %s21, 0
      %p42 = por %p40, %p41
      %p43 = scmp.ne.s32.totalorder %s29, %s30
      %p44 = scmp.eq.s32.totalorder %s22, 1
      %p45 = por %p43, %p44
      %p47 = scmp.ne.s32.totalorder %s30, %s46
      %p48 = scmp.eq.s32.totalorder %s22, 0
      %p49 = por %p47, %p48
      %s50 = ssub.s32 %s16, %s23
      %p51 = scmp.eq.s32.totalorder %s50, 0
      %s53 = sadd.s32 %s52, 1
      %s54 = scalar_select %p51, %s52, %s53
      %p57 = pneg %p51
      %p58 = scmp.eq.s32.totalorder %s16, 1
      %p59 = por %p57, %p58
      %p60 = scmp.ne.s32.totalorder %s52, %s55
      %p61 = scmp.eq.s32.totalorder %s16, 0
      %p62 = por %p60, %p61
      %p63 = scmp.ne.s32.totalorder %s52, %s55
      %p64 = scmp.eq.s32.totalorder %s21, 1
      %p65 = por %p63, %p64
      %p66 = scmp.ne.s32.totalorder %s55, %s56
      %p67 = scmp.eq.s32.totalorder %s21, 0
      %p68 = por %p66, %p67
      %p69 = scmp.ne.s32.totalorder %s55, %s56
      %p70 = scmp.eq.s32.totalorder %s22, 1
      %p71 = por %p69, %p70
      %p73 = scmp.ne.s32.totalorder %s56, %s72
      %p74 = scmp.eq.s32.totalorder %s22, 0
      %p75 = por %p73, %p74
      %s76 = ssub.s32 %s16, %s23
      %p77 = scmp.eq.s32.totalorder %s76, 0
      %s79 = sadd.s32 %s78, 1
      %s80 = scalar_select %p77, %s78, %s79
      %p83 = pneg %p77
      %p84 = scmp.eq.s32.totalorder %s16, 1
      %p85 = por %p83, %p84
      %p86 = scmp.ne.s32.totalorder %s78, %s81
      %p87 = scmp.eq.s32.totalorder %s16, 0
      %p88 = por %p86, %p87
      %p89 = scmp.ne.s32.totalorder %s78, %s81
      %p90 = scmp.eq.s32.totalorder %s21, 1
      %p91 = por %p89, %p90
      %p92 = scmp.ne.s32.totalorder %s81, %s82
      %p93 = scmp.eq.s32.totalorder %s21, 0
      %p94 = por %p92, %p93
      %p95 = scmp.ne.s32.totalorder %s81, %s82
      %p96 = scmp.eq.s32.totalorder %s22, 1
      %p97 = por %p95, %p96
      %p99 = scmp.ne.s32.totalorder %s82, %s98
      %p100 = scmp.eq.s32.totalorder %s22, 0
      %p101 = por %p99, %p100
      %s103 = sadd.s32 %s102, 1
      %p106 = scmp.eq.s32.totalorder %s16, 1
      %p107 = scmp.ne.s32.totalorder %s102, %s104
      %p108 = scmp.eq.s32.totalorder %s16, 0
      %p109 = por %p107, %p108
      %p110 = scmp.ne.s32.totalorder %s102, %s104
      %p111 = scmp.eq.s32.totalorder %s21, 1
      %p112 = por %p110, %p111
      %p113 = scmp.ne.s32.totalorder %s104, %s105
      %p114 = scmp.eq.s32.totalorder %s21, 0
      %p115 = por %p113, %p114
      %p116 = scmp.ne.s32.totalorder %s104, %s105
      %p117 = scmp.eq.s32.totalorder %s22, 1
      %p118 = por %p116, %p117
      %p120 = scmp.ne.s32.totalorder %s105, %s119
      %p121 = scmp.eq.s32.totalorder %s22, 0
      %p122 = por %p120, %p121
      %s124 = sadd.s32 %s123, 1
      %p127 = scmp.eq.s32.totalorder %s16, 1
      %p128 = scmp.ne.s32.totalorder %s123, %s125
      %p129 = scmp.eq.s32.totalorder %s16, 0
      %p130 = por %p128, %p129
      %p131 = scmp.ne.s32.totalorder %s123, %s125
      %p132 = scmp.eq.s32.totalorder %s21, 1
      %p133 = por %p131, %p132
      %p134 = scmp.ne.s32.totalorder %s125, %s126
      %p135 = scmp.eq.s32.totalorder %s21, 0
      %p136 = por %p134, %p135
      %p137 = scmp.ne.s32.totalorder %s125, %s126
      %p138 = scmp.eq.s32.totalorder %s22, 1
      %p139 = por %p137, %p138
      %p141 = scmp.ne.s32.totalorder %s126, %s140
      %p142 = scmp.eq.s32.totalorder %s22, 0
      %p143 = por %p141, %p142
      %s145 = sadd.s32 %s144, 1
      %p148 = scmp.eq.s32.totalorder %s16, 1
      %p149 = scmp.ne.s32.totalorder %s144, %s146
      %p150 = scmp.eq.s32.totalorder %s16, 0
      %p151 = por %p149, %p150
      %p152 = scmp.ne.s32.totalorder %s144, %s146
      %p153 = scmp.eq.s32.totalorder %s21, 1
      %p154 = por %p152, %p153
      %p155 = scmp.ne.s32.totalorder %s146, %s147
      %p156 = scmp.eq.s32.totalorder %s21, 0
      %p157 = por %p155, %p156
      %p158 = scmp.ne.s32.totalorder %s146, %s147
      %p159 = scmp.eq.s32.totalorder %s22, 1
      %p160 = por %p158, %p159
      %p162 = scmp.ne.s32.totalorder %s147, %s161
      %p163 = scmp.eq.s32.totalorder %s22, 0
      %p164 = por %p162, %p163
      %s166 = sadd.s32 %s165, 1
      %p169 = scmp.eq.s32.totalorder %s16, 1
      %p170 = scmp.ne.s32.totalorder %s165, %s167
      %p171 = scmp.eq.s32.totalorder %s16, 0
      %p172 = por %p170, %p171
      %p173 = scmp.ne.s32.totalorder %s165, %s167
      %p174 = scmp.eq.s32.totalorder %s21, 1
      %p175 = por %p173, %p174
      %p176 = scmp.ne.s32.totalorder %s167, %s168
      %p177 = scmp.eq.s32.totalorder %s21, 0
      %p178 = por %p176, %p177
      %p179 = scmp.ne.s32.totalorder %s167, %s168
      %p180 = scmp.eq.s32.totalorder %s22, 1
      %p181 = por %p179, %p180
      %p183 = scmp.ne.s32.totalorder %s168, %s182
      %p184 = scmp.eq.s32.totalorder %s22, 0
      %p185 = por %p183, %p184
      %s186 = ssub.s32 %s16, %s23
      %p187 = scmp.eq.s32.totalorder %s186, 0
      %s189 = sadd.s32 %s188, 1
      %s190 = scalar_select %p187, %s188, %s189
      %p193 = pneg %p187
      %p194 = scmp.eq.s32.totalorder %s16, 1
      %p195 = por %p193, %p194
      %p196 = scmp.ne.s32.totalorder %s188, %s191
      %p197 = scmp.eq.s32.totalorder %s16, 0
      %p198 = por %p196, %p197
      %p199 = scmp.ne.s32.totalorder %s188, %s191
      %p200 = scmp.eq.s32.totalorder %s21, 1
      %p201 = por %p199, %p200
      %p202 = scmp.ne.s32.totalorder %s191, %s192
      %p203 = scmp.eq.s32.totalorder %s21, 0
      %p204 = por %p202, %p203
      %p205 = scmp.ne.s32.totalorder %s191, %s192
      %p206 = scmp.eq.s32.totalorder %s22, 1
      %p207 = por %p205, %p206
      %p209 = scmp.ne.s32.totalorder %s192, %s208
      %p210 = scmp.eq.s32.totalorder %s22, 0
      %p211 = por %p209, %p210
      %p212 = scmp.le.s32.totalorder 1, %s16
      %p213 = scmp.lt.s32.totalorder %s16, 3
      %p214 = pnand %p212, %p213
      %p215 = pneg %p214
      // Predicated region
      $region9: #{tpu_custom_call.1} parent=5 // pred_check
        _
      $region10: #{tpu_custom_call.1} parent=5 // pred_check_branch
        %217 = sbr.rel (%p214) target = $region12
      $region11: #{tpu_custom_call.1} parent=5 // pred_region
        %s218 = ssub.s32 %s16, 1
        // Predicated region
        $region13: #{tpu_custom_call.1} parent=11 // pred_check
          %p219 = pneg %p115
        $region14: #{tpu_custom_call.1} parent=11 // pred_check_branch
          %221 = sbr.rel (%p219) target = $region16
        $region15: #{tpu_custom_call.1} parent=11 // pred_region
          _
        $region16: #{tpu_custom_call.1} parent=11 // pred_fallthru
          _
        // Predicated region
        $region17: #{tpu_custom_call.1} parent=11 // pred_check
          %p222 = pneg %p136
        $region18: #{tpu_custom_call.1} parent=11 // pred_check_branch
          %224 = sbr.rel (%p222) target = $region20
        $region19: #{tpu_custom_call.1} parent=11 // pred_region
          _
        $region20: #{tpu_custom_call.1} parent=11 // pred_fallthru
          _
        // Predicated region
        $region21: #{tpu_custom_call.1} parent=11 // pred_check
          %p225 = pneg %p157
        $region22: #{tpu_custom_call.1} parent=11 // pred_check_branch
          %227 = sbr.rel (%p225) target = $region24
        $region23: #{tpu_custom_call.1} parent=11 // pred_region
          _
        $region24: #{tpu_custom_call.1} parent=11 // pred_fallthru
          _
        // Predicated region
        $region25: #{tpu_custom_call.1} parent=11 // pred_check
          %p228 = pneg %p178
        $region26: #{tpu_custom_call.1} parent=11 // pred_check_branch
          %230 = sbr.rel (%p228) target = $region28
        $region27: #{tpu_custom_call.1} parent=11 // pred_region
          _
        $region28: #{tpu_custom_call.1} parent=11 // pred_fallthru
          _
      $region12: #{tpu_custom_call.1} parent=5 // pred_fallthru
        _
      %p231 = scmp.lt.s32.totalorder %s16, 2
      // Predicated region
      $region29: #{tpu_custom_call.1} parent=5 // pred_check
        %p232 = pneg %p231
      $region30: #{tpu_custom_call.1} parent=5 // pred_check_branch
        %234 = sbr.rel (%p232) target = $region32
      $region31: #{tpu_custom_call.1} parent=5 // pred_region
        // Predicated region
        $region33: #{tpu_custom_call.1} parent=31 // pred_check
          %p235 = pneg %p36
        $region34: #{tpu_custom_call.1} parent=31 // pred_check_branch
          %237 = sbr.rel (%p235) target = $region36
        $region35: #{tpu_custom_call.1} parent=31 // pred_region
          %p238 = scmp.lt.s32.totalorder %s16, 1
          %s239 = scalar_select %p238, %s16, 1
          %s240 = smul.addr %s239, 4
          %s241 = scalar_lea.vmem %s0, %s240
        $region36: #{tpu_custom_call.1} parent=31 // pred_fallthru
          _
        // Predicated region
        $region37: #{tpu_custom_call.1} parent=31 // pred_check
          %p242 = pneg %p62
        $region38: #{tpu_custom_call.1} parent=31 // pred_check_branch
          %244 = sbr.rel (%p242) target = $region40
        $region39: #{tpu_custom_call.1} parent=31 // pred_region
          %p245 = scmp.lt.s32.totalorder %s16, 1
          %s246 = scalar_select %p245, %s16, 1
          %s247 = smul.addr %s246, 4
          %s248 = scalar_lea.vmem %s1, %s247
        $region40: #{tpu_custom_call.1} parent=31 // pred_fallthru
          _
        // Predicated region
        $region41: #{tpu_custom_call.1} parent=31 // pred_check
          %p249 = pneg %p88
        $region42: #{tpu_custom_call.1} parent=31 // pred_check_branch
          %251 = sbr.rel (%p249) target = $region44
        $region43: #{tpu_custom_call.1} parent=31 // pred_region
          %p252 = scmp.lt.s32.totalorder %s16, 1
          %s253 = scalar_select %p252, %s16, 1
          %s254 = smul.addr %s253, 4
          %s255 = scalar_lea.vmem %s2, %s254
        $region44: #{tpu_custom_call.1} parent=31 // pred_fallthru
          _
      $region32: #{tpu_custom_call.1} parent=5 // pred_fallthru
        _
      %p256 = scmp.le.s32.totalorder 1, %s16
      %p257 = scmp.lt.s32.totalorder %s16, 3
      %p258 = pnand %p256, %p257
      %p259 = pneg %p258
      // Predicated region
      $region45: #{tpu_custom_call.1} parent=5 // pred_check
        _
      $region46: #{tpu_custom_call.1} parent=5 // pred_check_branch
        %261 = sbr.rel (%p258) target = $region48
      $region47: #{tpu_custom_call.1} parent=5 // pred_region
        %s262 = ssub.s32 %s16, 1
        %p263 = scmp.lt.s32.totalorder %s21, 1
        %s264 = scalar_select %p263, %s21, 1
        %s265 = smul.addr %s264, 4
        %s266 = scalar_lea.vmem %s0, %s265
        %p267 = pneg %p42
        %p268 = pneg %p39
        %p269 = scmp.lt.s32.totalorder %s21, 1
        %s270 = scalar_select %p269, %s21, 1
        %s271 = smul.addr %s270, 4
        %s272 = scalar_lea.vmem %s1, %s271
        %p273 = pneg %p68
        %p274 = pneg %p65
        %p275 = scmp.lt.s32.totalorder %s21, 1
        %s276 = scalar_select %p275, %s21, 1
        %s277 = smul.addr %s276, 4
        %s278 = scalar_lea.vmem %s2, %s277
        %p279 = pneg %p94
        %p280 = pneg %p91
        %p281 = pneg %p115
        %p282 = pneg %p112
        %p283 = pneg %p136
        %p284 = pneg %p133
        %p285 = pneg %p157
        %p286 = pneg %p154
        %p287 = pneg %p178
        %p288 = pneg %p175
        %p289 = pneg %p204
        %p290 = pneg %p201
        %s291 = sand.u32 %s191, 1
        %s292 = scalar_lea.sflag [#allocation3], %s291
        %s293 = sand.u32 %s191, 1
        %s294 = smul.addr %s293, 8
        %s295 = scalar_lea.vmem [#allocation2], %s294
        %p296 = scmp.lt.s32.totalorder %s21, 1
        %s297 = scalar_select %p296, %s21, 1
        %s298 = smul.addr %s297, 4
        %s299 = scalar_lea.vmem %s0, %s298
        %p300 = scmp.lt.s32.totalorder %s21, 1
        %s301 = scalar_select %p300, %s21, 1
        %s302 = smul.addr %s301, 4
        %s303 = scalar_lea.vmem %s1, %s302
        %p304 = scmp.lt.s32.totalorder %s21, 1
        %s305 = scalar_select %p304, %s21, 1
        %s306 = smul.addr %s305, 4
        %s307 = scalar_lea.vmem %s2, %s306
        %v309 = vld [vmem:[%s299] sm:$0xf]
        %v310 = vld [vmem:[%s303] sm:$0xf]
        %v311 = vld [vmem:[%s307] sm:$0xf]
        %v312 = vld [vmem:[%s3] sm:$0xf]
        %v313 = vld [vmem:[%s3 + $0x4] sm:$0xf]
        %v314 = vld [vmem:[%s3 + $0x8] sm:$0xf]
        %v315 = vld [vmem:[%s3 + $0xc] sm:$0xf]
        %v316 = vld [vmem:[%s4] sm:$0x1]
        %v318 = vlaneseq
        %v319 = vshrl.u32 %v318, 7
        %v320 = vsub.s32 0, %v319
        %v321 = vrot.slane %v316, %v320
        %v327 = vunpack.c.l.b16 %v312
        %v328 = vunpack.c.l.b16 %v313
        %v329 = vunpack.c.l.b16 %v314
        %v330 = vunpack.c.l.b16 %v315
        %v331 = vpack.c.b16 %v328, %v327
        %v332 = vpack.c.b16 %v330, %v329
        %vm335 = vcmask 261120
        %v337 = vsel %vm335, %v309, 0
        %339 = vmatprep.subr.bf16.mxu0 0
        %340 = vmatpush1.bf16.msra.mxu0 %v331
        %341 = vmatprep.subr.bf16.mxu0 0
        %342 = vmatpush1.bf16.msra.mxu0 %v332
        %343 = vmatprep.subr.bf16.mxu0 0
        %344 = vmatpush1.bf16.msra.mxu0 0
        %345 = vmatprep.subr.bf16.mxu0 0
        %346 = vmatpush1.bf16.msra.mxu0 0
        %347 = vmatprep.subr.bf16.mxu0 0
        %348 = vmatpush1.bf16.msra.mxu0 0
        %349 = vmatprep.subr.bf16.mxu0 0
        %350 = vmatpush1.bf16.msra.mxu0 0
        %351 = vmatprep.subr.bf16.mxu0 0
        %352 = vmatpush1.bf16.msra.mxu0 0
        %353 = vmatprep.subr.bf16.mxu0 0
        %354 = vmatpush1.bf16.msra.mxu0 0
        %355 = vmatprep.subr.bf16.mxu0 0
        %356 = vmatpush1.bf16.msra.mxu0 0
        %357 = vmatprep.subr.bf16.mxu0 0
        %358 = vmatpush1.bf16.msra.mxu0 0
        %359 = vmatprep.subr.bf16.mxu0 0
        %360 = vmatpush1.bf16.msra.mxu0 0
        %361 = vmatprep.subr.bf16.mxu0 0
        %362 = vmatpush1.bf16.msra.mxu0 0
        %363 = vmatprep.subr.bf16.mxu0 0
        %364 = vmatpush1.bf16.msra.mxu0 0
        %365 = vmatprep.subr.bf16.mxu0 0
        %366 = vmatpush1.bf16.msra.mxu0 0
        %367 = vmatprep.subr.bf16.mxu0 0
        %368 = vmatpush1.bf16.msra.mxu0 0
        %369 = vmatprep.subr.bf16.mxu0 0
        %370 = vmatpush1.bf16.msra.mxu0 0
        %371 = vmatprep.mubr.bf16.mxu0 0
        %372 = vmatmul.mubr.bf16.gmra.mrb[0].mxu0 %v337
        %v373 = vpop.f32.mrb[0].mxu0
        %v374 = vadd.f32 %v321, %v373
        %v375 = vpop.f32.mrb[0].mxu0
        %v376 = vpop.f32.mrb[0].mxu0
        %v377 = vpop.f32.mrb[0].mxu0
        %378 = vdwg.mxu0
        %s379 = scalar_lea.vmem %s3, 32
        %v380 = vld [vmem:[%s379] sm:$0xf]
        %v381 = vld [vmem:[%s379 + $0x4] sm:$0xf]
        %v382 = vld [vmem:[%s379 + $0x8] sm:$0xf]
        %v383 = vld [vmem:[%s379 + $0xc] sm:$0xf]
        %s384 = scalar_lea.vmem %s4, 2
        %v385 = vld [vmem:[%s384] sm:$0x1]
        %v387 = vlaneseq
        %v388 = vshrl.u32 %v387, 7
        %v389 = vsub.s32 0, %v388
        %v390 = vrot.slane %v385, %v389
        %v396 = vunpack.c.l.b16 %v380
        %v397 = vunpack.c.l.b16 %v381
        %v398 = vunpack.c.l.b16 %v382
        %v399 = vunpack.c.l.b16 %v383
        %v400 = vpack.c.b16 %v397, %v396
        %v401 = vpack.c.b16 %v399, %v398
        %v405 = vsel %vm335, %v310, 0
        %407 = vmatprep.subr.bf16.mxu0 0
        %408 = vmatpush1.bf16.msra.mxu0 %v400
        %409 = vmatprep.subr.bf16.mxu0 0
        %410 = vmatpush1.bf16.msra.mxu0 %v401
        %411 = vmatprep.subr.bf16.mxu0 0
        %412 = vmatpush1.bf16.msra.mxu0 0
        %413 = vmatprep.subr.bf16.mxu0 0
        %414 = vmatpush1.bf16.msra.mxu0 0
        %415 = vmatprep.subr.bf16.mxu0 0
        %416 = vmatpush1.bf16.msra.mxu0 0
        %417 = vmatprep.subr.bf16.mxu0 0
        %418 = vmatpush1.bf16.msra.mxu0 0
        %419 = vmatprep.subr.bf16.mxu0 0
        %420 = vmatpush1.bf16.msra.mxu0 0
        %421 = vmatprep.subr.bf16.mxu0 0
        %422 = vmatpush1.bf16.msra.mxu0 0
        %423 = vmatprep.subr.bf16.mxu0 0
        %424 = vmatpush1.bf16.msra.mxu0 0
        %425 = vmatprep.subr.bf16.mxu0 0
        %426 = vmatpush1.bf16.msra.mxu0 0
        %427 = vmatprep.subr.bf16.mxu0 0
        %428 = vmatpush1.bf16.msra.mxu0 0
        %429 = vmatprep.subr.bf16.mxu0 0
        %430 = vmatpush1.bf16.msra.mxu0 0
        %431 = vmatprep.subr.bf16.mxu0 0
        %432 = vmatpush1.bf16.msra.mxu0 0
        %433 = vmatprep.subr.bf16.mxu0 0
        %434 = vmatpush1.bf16.msra.mxu0 0
        %435 = vmatprep.subr.bf16.mxu0 0
        %436 = vmatpush1.bf16.msra.mxu0 0
        %437 = vmatprep.subr.bf16.mxu0 0
        %438 = vmatpush1.bf16.msra.mxu0 0
        %439 = vmatprep.mubr.bf16.mxu0 0
        %440 = vmatmul.mubr.bf16.gmra.mrb[0].mxu0 %v405
        %v441 = vpop.f32.mrb[0].mxu0
        %v442 = vadd.f32 %v390, %v441
        %v443 = vpop.f32.mrb[0].mxu0
        %v444 = vpop.f32.mrb[0].mxu0
        %v445 = vpop.f32.mrb[0].mxu0
        %446 = vdwg.mxu0
        %s447 = scalar_lea.vmem %s3, 64
        %v448 = vld [vmem:[%s447] sm:$0xf]
        %v449 = vld [vmem:[%s447 + $0x4] sm:$0xf]
        %v450 = vld [vmem:[%s447 + $0x8] sm:$0xf]
        %v451 = vld [vmem:[%s447 + $0xc] sm:$0xf]
        %s452 = scalar_lea.vmem %s4, 4
        %v453 = vld [vmem:[%s452] sm:$0x1]
        %v455 = vlaneseq
        %v456 = vshrl.u32 %v455, 7
        %v457 = vsub.s32 0, %v456
        %v458 = vrot.slane %v453, %v457
        %v464 = vunpack.c.l.b16 %v448
        %v465 = vunpack.c.l.b16 %v449
        %v466 = vunpack.c.l.b16 %v450
        %v467 = vunpack.c.l.b16 %v451
        %v468 = vpack.c.b16 %v465, %v464
        %v469 = vpack.c.b16 %v467, %v466
        %v473 = vsel %vm335, %v311, 0
        %475 = vmatprep.subr.bf16.mxu0 0
        %476 = vmatpush1.bf16.msra.mxu0 %v468
        %477 = vmatprep.subr.bf16.mxu0 0
        %478 = vmatpush1.bf16.msra.mxu0 %v469
        %479 = vmatprep.subr.bf16.mxu0 0
        %480 = vmatpush1.bf16.msra.mxu0 0
        %481 = vmatprep.subr.bf16.mxu0 0
        %482 = vmatpush1.bf16.msra.mxu0 0
        %483 = vmatprep.subr.bf16.mxu0 0
        %484 = vmatpush1.bf16.msra.mxu0 0
        %485 = vmatprep.subr.bf16.mxu0 0
        %486 = vmatpush1.bf16.msra.mxu0 0
        %487 = vmatprep.subr.bf16.mxu0 0
        %488 = vmatpush1.bf16.msra.mxu0 0
        %489 = vmatprep.subr.bf16.mxu0 0
        %490 = vmatpush1.bf16.msra.mxu0 0
        %491 = vmatprep.subr.bf16.mxu0 0
        %492 = vmatpush1.bf16.msra.mxu0 0
        %493 = vmatprep.subr.bf16.mxu0 0
        %494 = vmatpush1.bf16.msra.mxu0 0
        %495 = vmatprep.subr.bf16.mxu0 0
        %496 = vmatpush1.bf16.msra.mxu0 0
        %497 = vmatprep.subr.bf16.mxu0 0
        %498 = vmatpush1.bf16.msra.mxu0 0
        %499 = vmatprep.subr.bf16.mxu0 0
        %500 = vmatpush1.bf16.msra.mxu0 0
        %501 = vmatprep.subr.bf16.mxu0 0
        %502 = vmatpush1.bf16.msra.mxu0 0
        %503 = vmatprep.subr.bf16.mxu0 0
        %504 = vmatpush1.bf16.msra.mxu0 0
        %505 = vmatprep.subr.bf16.mxu0 0
        %506 = vmatpush1.bf16.msra.mxu0 0
        %507 = vmatprep.mubr.bf16.mxu0 0
        %508 = vmatmul.mubr.bf16.gmra.mrb[0].mxu0 %v473
        %v509 = vpop.f32.mrb[0].mxu0
        %v510 = vadd.f32 %v458, %v509
        %v511 = vpop.f32.mrb[0].mxu0
        %v512 = vpop.f32.mrb[0].mxu0
        %v513 = vpop.f32.mrb[0].mxu0
        %514 = vdwg.mxu0
        %vm515 = vcmask 130048
        %v517 = vsel %vm515, %v374, 0
        %v520 = vsel %vm515, %v442, 0
        %522 = vmatprep.subr.mxu0 0.0
        %523 = vmatpush1.xpose.msra.mxu0 %v520
        %524 = vmatprep.subr.mxu0 0.0
        %525 = vmatpush1.xpose.msra.mxu0 0.0
        %526 = vmatprep.subr.mxu0 0.0
        %527 = vmatpush1.xpose.msra.mxu0 0.0
        %528 = vmatprep.subr.mxu0 0.0
        %529 = vmatpush1.xpose.msra.mxu0 0.0
        %530 = vmatprep.subr.mxu0 0.0
        %531 = vmatpush1.xpose.msra.mxu0 0.0
        %532 = vmatprep.subr.mxu0 0.0
        %533 = vmatpush1.xpose.msra.mxu0 0.0
        %534 = vmatprep.subr.mxu0 0.0
        %535 = vmatpush1.xpose.msra.mxu0 0.0
        %536 = vmatprep.subr.mxu0 0.0
        %537 = vmatpush1.xpose.msra.mxu0 0.0
        %538 = vmatprep.subr.mxu0 0.0
        %539 = vmatpush1.xpose.msra.mxu0 0.0
        %540 = vmatprep.subr.mxu0 0.0
        %541 = vmatpush1.xpose.msra.mxu0 0.0
        %542 = vmatprep.subr.mxu0 0.0
        %543 = vmatpush1.xpose.msra.mxu0 0.0
        %544 = vmatprep.subr.mxu0 0.0
        %545 = vmatpush1.xpose.msra.mxu0 0.0
        %546 = vmatprep.subr.mxu0 0.0
        %547 = vmatpush1.xpose.msra.mxu0 0.0
        %548 = vmatprep.subr.mxu0 0.0
        %549 = vmatpush1.xpose.msra.mxu0 0.0
        %550 = vmatprep.subr.mxu0 0.0
        %551 = vmatpush1.xpose.msra.mxu0 0.0
        %552 = vmatprep.subr.mxu0 0.0
        %553 = vmatpush1.xpose.msra.mxu0 0.0
        %554 = vmatprep.subr.mxu0 0.0
        %555 = vmatpush1.xpose.msra.mxu0 0.0
        %556 = vmatprep.subr.mxu0 0.0
        %557 = vmatpush1.xpose.msra.mxu0 0.0
        %558 = vmatprep.subr.mxu0 0.0
        %559 = vmatpush1.xpose.msra.mxu0 0.0
        %560 = vmatprep.subr.mxu0 0.0
        %561 = vmatpush1.xpose.msra.mxu0 0.0
        %562 = vmatprep.subr.mxu0 0.0
        %563 = vmatpush1.xpose.msra.mxu0 0.0
        %564 = vmatprep.subr.mxu0 0.0
        %565 = vmatpush1.xpose.msra.mxu0 0.0
        %566 = vmatprep.subr.mxu0 0.0
        %567 = vmatpush1.xpose.msra.mxu0 0.0
        %568 = vmatprep.subr.mxu0 0.0
        %569 = vmatpush1.xpose.msra.mxu0 0.0
        %570 = vmatprep.subr.mxu0 0.0
        %571 = vmatpush1.xpose.msra.mxu0 0.0
        %572 = vmatprep.subr.mxu0 0.0
        %573 = vmatpush1.xpose.msra.mxu0 0.0
        %574 = vmatprep.subr.mxu0 0.0
        %575 = vmatpush1.xpose.msra.mxu0 0.0
        %576 = vmatprep.subr.mxu0 0.0
        %577 = vmatpush1.xpose.msra.mxu0 0.0
        %578 = vmatprep.subr.mxu0 0.0
        %579 = vmatpush1.xpose.msra.mxu0 0.0
        %580 = vmatprep.subr.mxu0 0.0
        %581 = vmatpush1.xpose.msra.mxu0 0.0
        %582 = vmatprep.subr.mxu0 0.0
        %583 = vmatpush1.xpose.msra.mxu0 0.0
        %584 = vmatprep.subr.mxu0 0.0
        %585 = vmatpush1.xpose.msra.mxu0 0.0
        %586 = vmatprep.mubr.f32.mxu0 0.0
        %587 = vmatmul.mubr.f32.gmra.mrb[0].mxu0 %v517
        %v588 = vpop.f32.mrb[0].mxu0
        %v589 = vadd.f32 0.0, %v588
        %v590 = vpop.f32.mrb[0].mxu0
        %591 = vdwg.mxu0
        %vm592 = vcmask 64512
        %v593 = vsel %vm592, %v589, -inf
        %594 = vmax.xlane.f32.xlu0 %v593
        %v595 = vpop.xlane.xlu0 %594
        %v596 = vsub.f32 %v589, %v595
        %v597 = vmul.f32 %v596, 1.442695
        %v598 = vpow.pop %v597
        %v599 = vsel %vm592, %v598, 0.0
        %600 = vadd.xlane.f32.xlu0 %v599
        %v601 = vpop.xlane.xlu0 %600
        %v602 = vrcp.pop %v601
        %v603 = vmul.f32 %v598, %v602
        %v605 = vsel %vm592, %v603, 0
        %607 = vmatprep.subr.mxu0 0.0
        %608 = vmatpush1.msra.mxu0 %v510
        %609 = vmatprep.subr.mxu0 0.0
        %610 = vmatpush1.msra.mxu0 0.0
        %611 = vmatprep.subr.mxu0 0.0
        %612 = vmatpush1.msra.mxu0 0.0
        %613 = vmatprep.subr.mxu0 0.0
        %614 = vmatpush1.msra.mxu0 0.0
        %615 = vmatprep.subr.mxu0 0.0
        %616 = vmatpush1.msra.mxu0 0.0
        %617 = vmatprep.subr.mxu0 0.0
        %618 = vmatpush1.msra.mxu0 0.0
        %619 = vmatprep.subr.mxu0 0.0
        %620 = vmatpush1.msra.mxu0 0.0
        %621 = vmatprep.subr.mxu0 0.0
        %622 = vmatpush1.msra.mxu0 0.0
        %623 = vmatprep.subr.mxu0 0.0
        %624 = vmatpush1.msra.mxu0 0.0
        %625 = vmatprep.subr.mxu0 0.0
        %626 = vmatpush1.msra.mxu0 0.0
        %627 = vmatprep.subr.mxu0 0.0
        %628 = vmatpush1.msra.mxu0 0.0
        %629 = vmatprep.subr.mxu0 0.0
        %630 = vmatpush1.msra.mxu0 0.0
        %631 = vmatprep.subr.mxu0 0.0
        %632 = vmatpush1.msra.mxu0 0.0
        %633 = vmatprep.subr.mxu0 0.0
        %634 = vmatpush1.msra.mxu0 0.0
        %635 = vmatprep.subr.mxu0 0.0
        %636 = vmatpush1.msra.mxu0 0.0
        %637 = vmatprep.subr.mxu0 0.0
        %638 = vmatpush1.msra.mxu0 0.0
        %639 = vmatprep.subr.mxu0 0.0
        %640 = vmatpush1.msra.mxu0 0.0
        %641 = vmatprep.subr.mxu0 0.0
        %642 = vmatpush1.msra.mxu0 0.0
        %643 = vmatprep.subr.mxu0 0.0
        %644 = vmatpush1.msra.mxu0 0.0
        %645 = vmatprep.subr.mxu0 0.0
        %646 = vmatpush1.msra.mxu0 0.0
        %647 = vmatprep.subr.mxu0 0.0
        %648 = vmatpush1.msra.mxu0 0.0
        %649 = vmatprep.subr.mxu0 0.0
        %650 = vmatpush1.msra.mxu0 0.0
        %651 = vmatprep.subr.mxu0 0.0
        %652 = vmatpush1.msra.mxu0 0.0
        %653 = vmatprep.subr.mxu0 0.0
        %654 = vmatpush1.msra.mxu0 0.0
        %655 = vmatprep.subr.mxu0 0.0
        %656 = vmatpush1.msra.mxu0 0.0
        %657 = vmatprep.subr.mxu0 0.0
        %658 = vmatpush1.msra.mxu0 0.0
        %659 = vmatprep.subr.mxu0 0.0
        %660 = vmatpush1.msra.mxu0 0.0
        %661 = vmatprep.subr.mxu0 0.0
        %662 = vmatpush1.msra.mxu0 0.0
        %663 = vmatprep.subr.mxu0 0.0
        %664 = vmatpush1.msra.mxu0 0.0
        %665 = vmatprep.subr.mxu0 0.0
        %666 = vmatpush1.msra.mxu0 0.0
        %667 = vmatprep.subr.mxu0 0.0
        %668 = vmatpush1.msra.mxu0 0.0
        %669 = vmatprep.subr.mxu0 0.0
        %670 = vmatpush1.msra.mxu0 0.0
        %671 = vmatprep.mubr.f32.mxu0 0.0
        %672 = vmatmul.mubr.f32.gmra.mrb[0].mxu0 %v605
        %v673 = vpop.f32.mrb[0].mxu0
        %v674 = vadd.f32 0.0, %v673
        %v675 = vpop.f32.mrb[0].mxu0
        %676 = vdwg.mxu0
        %v677 = vpack.c.bf16 %v674, %v674
        %v678 = vld [vmem:[%s5] sm:$0xf]
        %v679 = vld [vmem:[%s5 + $0x4] sm:$0xf]
        %s680 = scalar_lea.vmem %s3, 16
        %v681 = vld [vmem:[%s680] sm:$0xf]
        %v682 = vld [vmem:[%s680 + $0x4] sm:$0xf]
        %v683 = vld [vmem:[%s680 + $0x8] sm:$0xf]
        %v684 = vld [vmem:[%s680 + $0xc] sm:$0xf]
        %s685 = scalar_lea.vmem %s4, 1
        %v686 = vld [vmem:[%s685] sm:$0x1]
        %v688 = vlaneseq
        %v689 = vshrl.u32 %v688, 7
        %v690 = vsub.s32 0, %v689
        %v691 = vrot.slane %v686, %v690
        %v697 = vunpack.c.l.b16 %v681
        %v698 = vunpack.c.l.b16 %v682
        %v699 = vunpack.c.l.b16 %v683
        %v700 = vunpack.c.l.b16 %v684
        %v701 = vpack.c.b16 %v698, %v697
        %v702 = vpack.c.b16 %v700, %v699
        %705 = vmatprep.subr.bf16.mxu0 0
        %706 = vmatpush1.bf16.msra.mxu0 %v701
        %707 = vmatprep.subr.bf16.mxu0 0
        %708 = vmatpush1.bf16.msra.mxu0 %v702
        %709 = vmatprep.subr.bf16.mxu0 0
        %710 = vmatpush1.bf16.msra.mxu0 0
        %711 = vmatprep.subr.bf16.mxu0 0
        %712 = vmatpush1.bf16.msra.mxu0 0
        %713 = vmatprep.subr.bf16.mxu0 0
        %714 = vmatpush1.bf16.msra.mxu0 0
        %715 = vmatprep.subr.bf16.mxu0 0
        %716 = vmatpush1.bf16.msra.mxu0 0
        %717 = vmatprep.subr.bf16.mxu0 0
        %718 = vmatpush1.bf16.msra.mxu0 0
        %719 = vmatprep.subr.bf16.mxu0 0
        %720 = vmatpush1.bf16.msra.mxu0 0
        %721 = vmatprep.subr.bf16.mxu0 0
        %722 = vmatpush1.bf16.msra.mxu0 0
        %723 = vmatprep.subr.bf16.mxu0 0
        %724 = vmatpush1.bf16.msra.mxu0 0
        %725 = vmatprep.subr.bf16.mxu0 0
        %726 = vmatpush1.bf16.msra.mxu0 0
        %727 = vmatprep.subr.bf16.mxu0 0
        %728 = vmatpush1.bf16.msra.mxu0 0
        %729 = vmatprep.subr.bf16.mxu0 0
        %730 = vmatpush1.bf16.msra.mxu0 0
        %731 = vmatprep.subr.bf16.mxu0 0
        %732 = vmatpush1.bf16.msra.mxu0 0
        %733 = vmatprep.subr.bf16.mxu0 0
        %734 = vmatpush1.bf16.msra.mxu0 0
        %735 = vmatprep.subr.bf16.mxu0 0
        %736 = vmatpush1.bf16.msra.mxu0 0
        %737 = vmatprep.mubr.bf16.mxu0 0
        %738 = vmatmul.mubr.bf16.gmra.mrb[0].mxu0 %v337
        %v739 = vpop.f32.mrb[0].mxu0
        %v740 = vadd.f32 %v691, %v739
        %v741 = vpop.f32.mrb[0].mxu0
        %v742 = vpop.f32.mrb[0].mxu0
        %v743 = vpop.f32.mrb[0].mxu0
        %744 = vdwg.mxu0
        %s745 = scalar_lea.vmem %s3, 48
        %v746 = vld [vmem:[%s745] sm:$0xf]
        %v747 = vld [vmem:[%s745 + $0x4] sm:$0xf]
        %v748 = vld [vmem:[%s745 + $0x8] sm:$0xf]
        %v749 = vld [vmem:[%s745 + $0xc] sm:$0xf]
        %s750 = scalar_lea.vmem %s4, 3
        %v751 = vld [vmem:[%s750] sm:$0x1]
        %v753 = vlaneseq
        %v754 = vshrl.u32 %v753, 7
        %v755 = vsub.s32 0, %v754
        %v756 = vrot.slane %v751, %v755
        %v762 = vunpack.c.l.b16 %v746
        %v763 = vunpack.c.l.b16 %v747
        %v764 = vunpack.c.l.b16 %v748
        %v765 = vunpack.c.l.b16 %v749
        %v766 = vpack.c.b16 %v763, %v762
        %v767 = vpack.c.b16 %v765, %v764
        %770 = vmatprep.subr.bf16.mxu0 0
        %771 = vmatpush1.bf16.msra.mxu0 %v766
        %772 = vmatprep.subr.bf16.mxu0 0
        %773 = vmatpush1.bf16.msra.mxu0 %v767
        %774 = vmatprep.subr.bf16.mxu0 0
        %775 = vmatpush1.bf16.msra.mxu0 0
        %776 = vmatprep.subr.bf16.mxu0 0
        %777 = vmatpush1.bf16.msra.mxu0 0
        %778 = vmatprep.subr.bf16.mxu0 0
        %779 = vmatpush1.bf16.msra.mxu0 0
        %780 = vmatprep.subr.bf16.mxu0 0
        %781 = vmatpush1.bf16.msra.mxu0 0
        %782 = vmatprep.subr.bf16.mxu0 0
        %783 = vmatpush1.bf16.msra.mxu0 0
        %784 = vmatprep.subr.bf16.mxu0 0
        %785 = vmatpush1.bf16.msra.mxu0 0
        %786 = vmatprep.subr.bf16.mxu0 0
        %787 = vmatpush1.bf16.msra.mxu0 0
        %788 = vmatprep.subr.bf16.mxu0 0
        %789 = vmatpush1.bf16.msra.mxu0 0
        %790 = vmatprep.subr.bf16.mxu0 0
        %791 = vmatpush1.bf16.msra.mxu0 0
        %792 = vmatprep.subr.bf16.mxu0 0
        %793 = vmatpush1.bf16.msra.mxu0 0
        %794 = vmatprep.subr.bf16.mxu0 0
        %795 = vmatpush1.bf16.msra.mxu0 0
        %796 = vmatprep.subr.bf16.mxu0 0
        %797 = vmatpush1.bf16.msra.mxu0 0
        %798 = vmatprep.subr.bf16.mxu0 0
        %799 = vmatpush1.bf16.msra.mxu0 0
        %800 = vmatprep.subr.bf16.mxu0 0
        %801 = vmatpush1.bf16.msra.mxu0 0
        %802 = vmatprep.mubr.bf16.mxu0 0
        %803 = vmatmul.mubr.bf16.gmra.mrb[0].mxu0 %v405
        %v804 = vpop.f32.mrb[0].mxu0
        %v805 = vadd.f32 %v756, %v804
        %v806 = vpop.f32.mrb[0].mxu0
        %v807 = vpop.f32.mrb[0].mxu0
        %v808 = vpop.f32.mrb[0].mxu0
        %809 = vdwg.mxu0
        %s810 = scalar_lea.vmem %s3, 80
        %v811 = vld [vmem:[%s810] sm:$0xf]
        %v812 = vld [vmem:[%s810 + $0x4] sm:$0xf]
        %v813 = vld [vmem:[%s810 + $0x8] sm:$0xf]
        %v814 = vld [vmem:[%s810 + $0xc] sm:$0xf]
        %s815 = scalar_lea.vmem %s4, 5
        %v816 = vld [vmem:[%s815] sm:$0x1]
        %v818 = vlaneseq
        %v819 = vshrl.u32 %v818, 7
        %v820 = vsub.s32 0, %v819
        %v821 = vrot.slane %v816, %v820
        %v827 = vunpack.c.l.b16 %v811
        %v828 = vunpack.c.l.b16 %v812
        %v829 = vunpack.c.l.b16 %v813
        %v830 = vunpack.c.l.b16 %v814
        %v831 = vpack.c.b16 %v828, %v827
        %v832 = vpack.c.b16 %v830, %v829
        %835 = vmatprep.subr.bf16.mxu0 0
        %836 = vmatpush1.bf16.msra.mxu0 %v831
        %837 = vmatprep.subr.bf16.mxu0 0
        %838 = vmatpush1.bf16.msra.mxu0 %v832
        %839 = vmatprep.subr.bf16.mxu0 0
        %840 = vmatpush1.bf16.msra.mxu0 0
        %841 = vmatprep.subr.bf16.mxu0 0
        %842 = vmatpush1.bf16.msra.mxu0 0
        %843 = vmatprep.subr.bf16.mxu0 0
        %844 = vmatpush1.bf16.msra.mxu0 0
        %845 = vmatprep.subr.bf16.mxu0 0
        %846 = vmatpush1.bf16.msra.mxu0 0
        %847 = vmatprep.subr.bf16.mxu0 0
        %848 = vmatpush1.bf16.msra.mxu0 0
        %849 = vmatprep.subr.bf16.mxu0 0
        %850 = vmatpush1.bf16.msra.mxu0 0
        %851 = vmatprep.subr.bf16.mxu0 0
        %852 = vmatpush1.bf16.msra.mxu0 0
        %853 = vmatprep.subr.bf16.mxu0 0
        %854 = vmatpush1.bf16.msra.mxu0 0
        %855 = vmatprep.subr.bf16.mxu0 0
        %856 = vmatpush1.bf16.msra.mxu0 0
        %857 = vmatprep.subr.bf16.mxu0 0
        %858 = vmatpush1.bf16.msra.mxu0 0
        %859 = vmatprep.subr.bf16.mxu0 0
        %860 = vmatpush1.bf16.msra.mxu0 0
        %861 = vmatprep.subr.bf16.mxu0 0
        %862 = vmatpush1.bf16.msra.mxu0 0
        %863 = vmatprep.subr.bf16.mxu0 0
        %864 = vmatpush1.bf16.msra.mxu0 0
        %865 = vmatprep.subr.bf16.mxu0 0
        %866 = vmatpush1.bf16.msra.mxu0 0
        %867 = vmatprep.mubr.bf16.mxu0 0
        %868 = vmatmul.mubr.bf16.gmra.mrb[0].mxu0 %v473
        %v869 = vpop.f32.mrb[0].mxu0
        %v870 = vadd.f32 %v821, %v869
        %v871 = vpop.f32.mrb[0].mxu0
        %v872 = vpop.f32.mrb[0].mxu0
        %v873 = vpop.f32.mrb[0].mxu0
        %874 = vdwg.mxu0
        %v876 = vsel %vm515, %v740, 0
        %v879 = vsel %vm515, %v805, 0
        %881 = vmatprep.subr.mxu0 0.0
        %882 = vmatpush1.xpose.msra.mxu0 %v879
        %883 = vmatprep.subr.mxu0 0.0
        %884 = vmatpush1.xpose.msra.mxu0 0.0
        %885 = vmatprep.subr.mxu0 0.0
        %886 = vmatpush1.xpose.msra.mxu0 0.0
        %887 = vmatprep.subr.mxu0 0.0
        %888 = vmatpush1.xpose.msra.mxu0 0.0
        %889 = vmatprep.subr.mxu0 0.0
        %890 = vmatpush1.xpose.msra.mxu0 0.0
        %891 = vmatprep.subr.mxu0 0.0
        %892 = vmatpush1.xpose.msra.mxu0 0.0
        %893 = vmatprep.subr.mxu0 0.0
        %894 = vmatpush1.xpose.msra.mxu0 0.0
        %895 = vmatprep.subr.mxu0 0.0
        %896 = vmatpush1.xpose.msra.mxu0 0.0
        %897 = vmatprep.subr.mxu0 0.0
        %898 = vmatpush1.xpose.msra.mxu0 0.0
        %899 = vmatprep.subr.mxu0 0.0
        %900 = vmatpush1.xpose.msra.mxu0 0.0
        %901 = vmatprep.subr.mxu0 0.0
        %902 = vmatpush1.xpose.msra.mxu0 0.0
        %903 = vmatprep.subr.mxu0 0.0
        %904 = vmatpush1.xpose.msra.mxu0 0.0
        %905 = vmatprep.subr.mxu0 0.0
        %906 = vmatpush1.xpose.msra.mxu0 0.0
        %907 = vmatprep.subr.mxu0 0.0
        %908 = vmatpush1.xpose.msra.mxu0 0.0
        %909 = vmatprep.subr.mxu0 0.0
        %910 = vmatpush1.xpose.msra.mxu0 0.0
        %911 = vmatprep.subr.mxu0 0.0
        %912 = vmatpush1.xpose.msra.mxu0 0.0
        %913 = vmatprep.subr.mxu0 0.0
        %914 = vmatpush1.xpose.msra.mxu0 0.0
        %915 = vmatprep.subr.mxu0 0.0
        %916 = vmatpush1.xpose.msra.mxu0 0.0
        %917 = vmatprep.subr.mxu0 0.0
        %918 = vmatpush1.xpose.msra.mxu0 0.0
        %919 = vmatprep.subr.mxu0 0.0
        %920 = vmatpush1.xpose.msra.mxu0 0.0
        %921 = vmatprep.subr.mxu0 0.0
        %922 = vmatpush1.xpose.msra.mxu0 0.0
        %923 = vmatprep.subr.mxu0 0.0
        %924 = vmatpush1.xpose.msra.mxu0 0.0
        %925 = vmatprep.subr.mxu0 0.0
        %926 = vmatpush1.xpose.msra.mxu0 0.0
        %927 = vmatprep.subr.mxu0 0.0
        %928 = vmatpush1.xpose.msra.mxu0 0.0
        %929 = vmatprep.subr.mxu0 0.0
        %930 = vmatpush1.xpose.msra.mxu0 0.0
        %931 = vmatprep.subr.mxu0 0.0
        %932 = vmatpush1.xpose.msra.mxu0 0.0
        %933 = vmatprep.subr.mxu0 0.0
        %934 = vmatpush1.xpose.msra.mxu0 0.0
        %935 = vmatprep.subr.mxu0 0.0
        %936 = vmatpush1.xpose.msra.mxu0 0.0
        %937 = vmatprep.subr.mxu0 0.0
        %938 = vmatpush1.xpose.msra.mxu0 0.0
        %939 = vmatprep.subr.mxu0 0.0
        %940 = vmatpush1.xpose.msra.mxu0 0.0
        %941 = vmatprep.subr.mxu0 0.0
        %942 = vmatpush1.xpose.msra.mxu0 0.0
        %943 = vmatprep.subr.mxu0 0.0
        %944 = vmatpush1.xpose.msra.mxu0 0.0
        %945 = vmatprep.mubr.f32.mxu0 0.0
        %946 = vmatmul.mubr.f32.gmra.mrb[0].mxu0 %v876
        %v947 = vpop.f32.mrb[0].mxu0
        %v948 = vadd.f32 0.0, %v947
        %v949 = vpop.f32.mrb[0].mxu0
        %950 = vdwg.mxu0
        %v951 = vsel %vm592, %v948, -inf
        %952 = vmax.xlane.f32.xlu0 %v951
        %v953 = vpop.xlane.xlu0 %952
        %v954 = vsub.f32 %v948, %v953
        %v955 = vmul.f32 %v954, 1.442695
        %v956 = vpow.pop %v955
        %v957 = vsel %vm592, %v956, 0.0
        %958 = vadd.xlane.f32.xlu0 %v957
        %v959 = vpop.xlane.xlu0 %958
        %v960 = vrcp.pop %v959
        %v961 = vmul.f32 %v956, %v960
        %v963 = vsel %vm592, %v961, 0
        %965 = vmatprep.subr.mxu0 0.0
        %966 = vmatpush1.msra.mxu0 %v870
        %967 = vmatprep.subr.mxu0 0.0
        %968 = vmatpush1.msra.mxu0 0.0
        %969 = vmatprep.subr.mxu0 0.0
        %970 = vmatpush1.msra.mxu0 0.0
        %971 = vmatprep.subr.mxu0 0.0
        %972 = vmatpush1.msra.mxu0 0.0
        %973 = vmatprep.subr.mxu0 0.0
        %974 = vmatpush1.msra.mxu0 0.0
        %975 = vmatprep.subr.mxu0 0.0
        %976 = vmatpush1.msra.mxu0 0.0
        %977 = vmatprep.subr.mxu0 0.0
        %978 = vmatpush1.msra.mxu0 0.0
        %979 = vmatprep.subr.mxu0 0.0
        %980 = vmatpush1.msra.mxu0 0.0
        %981 = vmatprep.subr.mxu0 0.0
        %982 = vmatpush1.msra.mxu0 0.0
        %983 = vmatprep.subr.mxu0 0.0
        %984 = vmatpush1.msra.mxu0 0.0
        %985 = vmatprep.subr.mxu0 0.0
        %986 = vmatpush1.msra.mxu0 0.0
        %987 = vmatprep.subr.mxu0 0.0
        %988 = vmatpush1.msra.mxu0 0.0
        %989 = vmatprep.subr.mxu0 0.0
        %990 = vmatpush1.msra.mxu0 0.0
        %991 = vmatprep.subr.mxu0 0.0
        %992 = vmatpush1.msra.mxu0 0.0
        %993 = vmatprep.subr.mxu0 0.0
        %994 = vmatpush1.msra.mxu0 0.0
        %995 = vmatprep.subr.mxu0 0.0
        %996 = vmatpush1.msra.mxu0 0.0
        %997 = vmatprep.subr.mxu0 0.0
        %998 = vmatpush1.msra.mxu0 0.0
        %999 = vmatprep.subr.mxu0 0.0
        %1000 = vmatpush1.msra.mxu0 0.0
        %1001 = vmatprep.subr.mxu0 0.0
        %1002 = vmatpush1.msra.mxu0 0.0
        %1003 = vmatprep.subr.mxu0 0.0
        %1004 = vmatpush1.msra.mxu0 0.0
        %1005 = vmatprep.subr.mxu0 0.0
        %1006 = vmatpush1.msra.mxu0 0.0
        %1007 = vmatprep.subr.mxu0 0.0
        %1008 = vmatpush1.msra.mxu0 0.0
        %1009 = vmatprep.subr.mxu0 0.0
        %1010 = vmatpush1.msra.mxu0 0.0
        %1011 = vmatprep.subr.mxu0 0.0
        %1012 = vmatpush1.msra.mxu0 0.0
        %1013 = vmatprep.subr.mxu0 0.0
        %1014 = vmatpush1.msra.mxu0 0.0
        %1015 = vmatprep.subr.mxu0 0.0
        %1016 = vmatpush1.msra.mxu0 0.0
        %1017 = vmatprep.subr.mxu0 0.0
        %1018 = vmatpush1.msra.mxu0 0.0
        %1019 = vmatprep.subr.mxu0 0.0
        %1020 = vmatpush1.msra.mxu0 0.0
        %1021 = vmatprep.subr.mxu0 0.0
        %1022 = vmatpush1.msra.mxu0 0.0
        %1023 = vmatprep.subr.mxu0 0.0
        %1024 = vmatpush1.msra.mxu0 0.0
        %1025 = vmatprep.subr.mxu0 0.0
        %1026 = vmatpush1.msra.mxu0 0.0
        %1027 = vmatprep.subr.mxu0 0.0
        %1028 = vmatpush1.msra.mxu0 0.0
        %1029 = vmatprep.mubr.f32.mxu0 0.0
        %1030 = vmatmul.mubr.f32.gmra.mrb[0].mxu0 %v963
        %v1031 = vpop.f32.mrb[0].mxu0
        %v1032 = vadd.f32 0.0, %v1031
        %v1033 = vpop.f32.mrb[0].mxu0
        %1034 = vdwg.mxu0
        %v1035 = vpack.c.bf16 %v1032, %v1032
        %s1036 = scalar_lea.vmem %s5, 8
        %v1037 = vld [vmem:[%s1036] sm:$0xf]
        %v1038 = vld [vmem:[%s1036 + $0x4] sm:$0xf]
        %v1041 = vunpack.c.l.b16 %v1037
        %v1042 = vunpack.c.l.b16 %v1038
        %v1043 = vpack.c.b16 %v1042, %v1041
        %v1046 = vsel %vm515, %v1035, 0
        %1048 = vmatprep.subr.bf16.mxu0 0
        %1049 = vmatpush1.bf16.msra.mxu0 %v1043
        %1050 = vmatprep.subr.bf16.mxu0 0
        %1051 = vmatpush1.bf16.msra.mxu0 0
        %1052 = vmatprep.subr.bf16.mxu0 0
        %1053 = vmatpush1.bf16.msra.mxu0 0
        %1054 = vmatprep.subr.bf16.mxu0 0
        %1055 = vmatpush1.bf16.msra.mxu0 0
        %1056 = vmatprep.subr.bf16.mxu0 0
        %1057 = vmatpush1.bf16.msra.mxu0 0
        %1058 = vmatprep.subr.bf16.mxu0 0
        %1059 = vmatpush1.bf16.msra.mxu0 0
        %1060 = vmatprep.subr.bf16.mxu0 0
        %1061 = vmatpush1.bf16.msra.mxu0 0
        %1062 = vmatprep.subr.bf16.mxu0 0
        %1063 = vmatpush1.bf16.msra.mxu0 0
        %1064 = vmatprep.subr.bf16.mxu0 0
        %1065 = vmatpush1.bf16.msra.mxu0 0
        %1066 = vmatprep.subr.bf16.mxu0 0
        %1067 = vmatpush1.bf16.msra.mxu0 0
        %1068 = vmatprep.subr.bf16.mxu0 0
        %1069 = vmatpush1.bf16.msra.mxu0 0
        %1070 = vmatprep.subr.bf16.mxu0 0
        %1071 = vmatpush1.bf16.msra.mxu0 0
        %1072 = vmatprep.subr.bf16.mxu0 0
        %1073 = vmatpush1.bf16.msra.mxu0 0
        %1074 = vmatprep.subr.bf16.mxu0 0
        %1075 = vmatpush1.bf16.msra.mxu0 0
        %1076 = vmatprep.subr.bf16.mxu0 0
        %1077 = vmatpush1.bf16.msra.mxu0 0
        %1078 = vmatprep.subr.bf16.mxu0 0
        %1079 = vmatpush1.bf16.msra.mxu0 0
        %1080 = vmatprep.mubr.bf16.mxu0 0
        %1081 = vmatmul.mubr.bf16.gmra.mrb[0].mxu0 %v1046
        %v1082 = vpop.f32.mrb[0].mxu0
        %v1083 = vadd.f32 0.0, %v1082
        %v1084 = vpop.f32.mrb[0].mxu0
        %v1085 = vpop.f32.mrb[0].mxu0
        %v1086 = vpop.f32.mrb[0].mxu0
        %1087 = vdwg.mxu0
        %v1090 = vunpack.c.l.b16 %v678
        %v1091 = vunpack.c.l.b16 %v679
        %v1092 = vpack.c.b16 %v1091, %v1090
        %v1095 = vsel %vm515, %v677, 0
        %1097 = vmatprep.subr.bf16.mxu0 0
        %1098 = vmatpush1.bf16.msra.mxu0 %v1092
        %1099 = vmatprep.subr.bf16.mxu0 0
        %1100 = vmatpush1.bf16.msra.mxu0 0
        %1101 = vmatprep.subr.bf16.mxu0 0
        %1102 = vmatpush1.bf16.msra.mxu0 0
        %1103 = vmatprep.subr.bf16.mxu0 0
        %1104 = vmatpush1.bf16.msra.mxu0 0
        %1105 = vmatprep.subr.bf16.mxu0 0
        %1106 = vmatpush1.bf16.msra.mxu0 0
        %1107 = vmatprep.subr.bf16.mxu0 0
        %1108 = vmatpush1.bf16.msra.mxu0 0
        %1109 = vmatprep.subr.bf16.mxu0 0
        %1110 = vmatpush1.bf16.msra.mxu0 0
        %1111 = vmatprep.subr.bf16.mxu0 0
        %1112 = vmatpush1.bf16.msra.mxu0 0
        %1113 = vmatprep.subr.bf16.mxu0 0
        %1114 = vmatpush1.bf16.msra.mxu0 0
        %1115 = vmatprep.subr.bf16.mxu0 0
        %1116 = vmatpush1.bf16.msra.mxu0 0
        %1117 = vmatprep.subr.bf16.mxu0 0
        %1118 = vmatpush1.bf16.msra.mxu0 0
        %1119 = vmatprep.subr.bf16.mxu0 0
        %1120 = vmatpush1.bf16.msra.mxu0 0
        %1121 = vmatprep.subr.bf16.mxu0 0
        %1122 = vmatpush1.bf16.msra.mxu0 0
        %1123 = vmatprep.subr.bf16.mxu0 0
        %1124 = vmatpush1.bf16.msra.mxu0 0
        %1125 = vmatprep.subr.bf16.mxu0 0
        %1126 = vmatpush1.bf16.msra.mxu0 0
        %1127 = vmatprep.subr.bf16.mxu0 0
        %1128 = vmatpush1.bf16.msra.mxu0 0
        %1129 = vmatprep.mubr.bf16.mxu0 0
        %1130 = vmatmul.mubr.bf16.gmra.mrb[0].mxu0 %v1095
        %v1131 = vpop.f32.mrb[0].mxu0
        %v1132 = vadd.f32 %v1083, %v1131
        %v1133 = vpop.f32.mrb[0].mxu0
        %v1134 = vpop.f32.mrb[0].mxu0
        %v1135 = vpop.f32.mrb[0].mxu0
        %1136 = vdwg.mxu0
        %v1137 = vld [vmem:[%s6] sm:$0x1]
        %v1139 = vlaneseq
        %v1140 = vshrl.u32 %v1139, 7
        %v1141 = vsub.s32 0, %v1140
        %v1142 = vrot.slane %v1137, %v1141
        %v1144 = vadd.f32 %v1132, %v1142
        %1145 = vst.msk [vmem:[%s295] sm:$0xff] %vm335, %v1144
        %s1146 = sand.u32 %s191, 1
        %s1147 = scalar_lea.sflag [#allocation3], %s1146
        %s1148 = sand.u32 %s191, 1
        %s1149 = smul.addr %s1148, 8
        %s1150 = scalar_lea.vmem [#allocation2], %s1149
        // Predicated region
        $region49: #{tpu_custom_call.1} parent=47 // pred_check
          %p1151 = pneg %p201
        $region50: #{tpu_custom_call.1} parent=47 // pred_check_branch
          %1153 = sbr.rel (%p1151) target = $region52
        $region51: #{tpu_custom_call.1} parent=47 // pred_region
          %s1155 = ssub.s32 128, 128
          %1156 = vsyncadd %s1147, %s1155
          %s1157 = smul.addr %s21, 128
          %s1158 = scalar_lea.hbm %s7, %s1157
          %s1160 = sshll.u32 %s1150, 4
          %s1161 = int_to_ptr.vmem [resolvable:$true] %s1160
          %1163 = dma.vmem_to_hbm [thread:$0]  %s1161, 128, %s1158, %s1147
        $region52: #{tpu_custom_call.1} parent=47 // pred_fallthru
          _
      $region48: #{tpu_custom_call.1} parent=5 // pred_fallthru
        _
      %p1164 = scmp.le.s32.totalorder 2, %s16
      // Predicated region
      $region53: #{tpu_custom_call.1} parent=5 // pred_check
        %p1165 = pneg %p1164
      $region54: #{tpu_custom_call.1} parent=5 // pred_check_branch
        %1167 = sbr.rel (%p1165) target = $region56
      $region55: #{tpu_custom_call.1} parent=5 // pred_region
        %s1168 = ssub.s32 %s16, 2
        // Predicated region
        $region57: #{tpu_custom_call.1} parent=55 // pred_check
          %p1169 = pneg %p207
        $region58: #{tpu_custom_call.1} parent=55 // pred_check_branch
          %1171 = sbr.rel (%p1169) target = $region60
        $region59: #{tpu_custom_call.1} parent=55 // pred_region
          %s1172 = sand.u32 %s192, 1
          %s1173 = scalar_lea.sflag [#allocation3], %s1172
          %s1174 = sand.u32 %s192, 1
          %s1175 = smul.addr %s1174, 8
          %s1176 = scalar_lea.vmem [#allocation2], %s1175
          %1177 = dma.done %s1173, 128
        $region60: #{tpu_custom_call.1} parent=55 // pred_fallthru
          _
      $region56: #{tpu_custom_call.1} parent=5 // pred_fallthru
        _
    $region6: #{tpu_custom_call.1} parent=1 // loop_footer
      %s20 = sadd.s32 1, %s16
    $region7: #{tpu_custom_call.1} parent=1 // loop_footer_branch
      %15 = sbr.rel target = $region3
    $region8: #{tpu_custom_call.1} parent=1 // loop_exit
      _
    %1178 = vsyncpa [#allocation3], 1
    %s1179 = scalar_lea.sflag [#allocation3], 1
    %1180 = vsyncpa %s1179, 1

</llo_original>
